<compile_context>
chip_gen: v5e
topology: v5e:2x2
jax: 0.10.0
libtpu: 0.0.40
codegen_flags: <defaults>
</compile_context>

<pallas_src>
import functools

import jax
import jax.numpy as jnp
from jax.experimental import pallas as pl
from jax.experimental.pallas import tpu as pltpu


def _round_up(v, m):
    return (v + m - 1) // m * m


# ---------------------------------------------------------------------------
# Kernel:  y = x @ W' + b'     (normalization already folded into W', b')
# Grid: (i over batch tiles, j over class tiles, k over feature-reduction tiles)
# ---------------------------------------------------------------------------
def _matmul_bias_kernel(x_ref, w_ref, b_ref, o_ref, acc_ref):
    k = pl.program_id(2)

    @pl.when(k == 0)
    def _init():
        acc_ref[...] = jnp.zeros_like(acc_ref)

    # bf16 operands, f32 accumulation on the MXU.
    acc_ref[...] += jnp.dot(x_ref[...], w_ref[...],
                            preferred_element_type=jnp.float32)

    @pl.when(k == pl.num_programs(2) - 1)
    def _finalize():
        # Bias added exactly once, in f32, in the epilogue.
        o_ref[...] = (acc_ref[...] + b_ref[...]).astype(o_ref.dtype)


# ---------------------------------------------------------------------------
# One-time host-side preparation: fold normalization into the head, pad, cast.
# ---------------------------------------------------------------------------
def prepare_wrapper_params(mean, std, w, b, spatial_size, *,
                           tn=128, tk=512, mxu_dtype=jnp.bfloat16):
    """mean/std: (C,) f32; w: (D, K) f32; b: (1, K) f32; D = C * spatial_size."""
    D, K = w.shape

    inv_std = 1.0 / std                                   # exact reciprocal once
    mean_flat = jnp.repeat(mean, spatial_size)            # (D,) flattened NCHW order
    inv_std_flat = jnp.repeat(inv_std, spatial_size)      # (D,)

    # (x - m) * s @ W + b  ==  x @ (s[:,None] * W) + (b - (m * s) @ W)
    w_folded = inv_std_flat[:, None] * w                  # (D, K) f32
    b_folded = b.reshape(1, K) - (mean_flat * inv_std_flat)[None, :] @ w  # (1, K) f32

    d_pad = _round_up(D, tk)
    k_pad = _round_up(K, tn)
    # Zero-padded feature rows of W' contribute exactly 0 regardless of x pad.
    w_p = (jnp.zeros((d_pad, k_pad), jnp.float32)
           .at[:D, :K].set(w_folded).astype(mxu_dtype))
    b_p = jnp.zeros((1, k_pad), jnp.float32).at[:, :K].set(b_folded)
    return w_p, b_p


# ---------------------------------------------------------------------------
# ModelWrapper forward (per-call path: pad+cast x, run the matmul kernel)
# ---------------------------------------------------------------------------
def model_wrapper_forward(x, w_p, b_p, *, num_classes,
                          tm=128, tn=128, tk=512, mxu_dtype=jnp.bfloat16):
    """x: (N, C, H, W) f32; w_p: (d_pad, k_pad) bf16; b_p: (1, k_pad) f32."""
    N, C, H, W = x.shape
    D = C * H * W
    d_pad, k_pad = w_p.shape
    assert d_pad % tk == 0 and k_pad % tn == 0

    x_flat = x.reshape(N, D)

    # Pad batch to a multiple of tm (for N <= tm this keeps the i-axis at 1
    # block so W' is streamed from HBM exactly once) and features to d_pad.
    # Padded feature columns hit zero rows of W', so their value is irrelevant.
    # TODO(synk): for very large N with a ragged edge, handle the last batch
    # tile with a masked epilogue instead of materializing a zero-padded copy.
    n_pad = _round_up(max(N, tm), tm)
    x_p = (jnp.zeros((n_pad, d_pad), jnp.float32)
           .at[:N, :D].set(x_flat).astype(mxu_dtype))

    grid = (n_pad // tm, k_pad // tn, d_pad // tk)

    out_padded = pl.pallas_call(
        _matmul_bias_kernel,
        out_shape=jax.ShapeDtypeStruct((n_pad, k_pad), jnp.float32),
        grid_spec=pltpu.PrefetchScalarGridSpec(
            num_scalar_prefetch=0,
            grid=grid,
            in_specs=[
                pl.BlockSpec((tm, tk), lambda i, j, k: (i, k)),  # x
                pl.BlockSpec((tk, tn), lambda i, j, k: (k, j)),  # W' (folded)
                pl.BlockSpec((1, tn), lambda i, j, k: (0, j)),   # b' (folded)
            ],
            out_specs=pl.BlockSpec((tm, tn), lambda i, j, k: (i, j)),
            scratch_shapes=[pltpu.VMEM((tm, tn), jnp.float32)],
        ),
        compiler_params=pltpu.CompilerParams(
            dimension_semantics=("parallel", "parallel", "arbitrary"),
            vmem_limit_bytes=48 * 1024 * 1024,
        ),
    )(x_p, w_p, b_p)

    return out_padded[:N, :num_classes]


if __name__ == "__main__":
    key = jax.random.PRNGKey(0)
    k_x, k_w, k_b = jax.random.split(key, 3)

    # ModelWrapper hard-codes 3 channels (mean.view(1, 3, 1, 1)).
    N, C, H, W = 2, 3, 16, 16
    num_classes = 10
    D = C * H * W

    x = jax.random.uniform(k_x, (N, C, H, W), dtype=jnp.float32)

    # Deterministic normalization constants (ImageNet-style).
    mean = jnp.array([0.485, 0.456, 0.406], dtype=jnp.float32)
    std = jnp.array([0.229, 0.224, 0.225], dtype=jnp.float32)

    # Deterministic synthetic wrapped "model" parameters (flatten -> linear).
    w = jax.random.normal(k_w, (D, num_classes), dtype=jnp.float32) * 0.02
    b = jax.random.normal(k_b, (1, num_classes), dtype=jnp.float32) * 0.01

    # One-time host-side fold + pad + cast (hoisted out of the per-call path).
    w_p, b_p = prepare_wrapper_params(mean, std, w, b, H * W)

    forward = jax.jit(functools.partial(
        model_wrapper_forward, w_p=w_p, b_p=b_p, num_classes=num_classes))

    out = forward(x)
    jax.block_until_ready(out)

    # Reference check against plain JAX (f32, unfolded).
    x_ref = (x - mean.reshape(1, 3, 1, 1)) / std.reshape(1, 3, 1, 1)
    ref = x_ref.reshape(N, -1) @ w + b
    assert out.shape == (N, num_classes)
    # bf16 MXU operands with f32 accumulation: tolerance relaxed accordingly.
    assert jnp.allclose(out, ref, atol=2e-2, rtol=2e-2), "mismatch vs reference"

    print("KERNEL_OK")
</pallas_src>

<mosaic_0001>
module attributes {stable_mosaic.version = 11 : i64} {
  func.func @_matmul_bias_kernel(%arg0: i32, %arg1: i32, %arg2: i32, %arg3: memref<128x512xbf16, #tpu.memory_space<vmem>>, %arg4: memref<512x128xbf16, #tpu.memory_space<vmem>>, %arg5: memref<1x128xf32, #tpu.memory_space<vmem>>, %arg6: memref<128x128xf32, #tpu.memory_space<vmem>>, %arg7: memref<128x128xf32, #tpu.memory_space<vmem>>) attributes {dimension_semantics = [#tpu.dimension_semantics<parallel>, #tpu.dimension_semantics<parallel>, #tpu.dimension_semantics<arbitrary>], iteration_bounds = array<i64: 1, 1, 2>, scalar_prefetch = 0 : i64, scratch_operands = 1 : i64, tpu.core_type = #tpu.core_type<tc>, window_params = [{transform_indices = @transform_0, window_bounds = array<i64: 128, 512>}, {transform_indices = @transform_1, window_bounds = array<i64: 512, 128>}, {transform_indices = @transform_2, window_bounds = array<i64: 1, 128>}, {transform_indices = @transform_3, window_bounds = array<i64: 128, 128>}]} {
    %c0_i32 = arith.constant 0 : i32
    %0 = arith.cmpi eq, %arg2, %c0_i32 : i32
    %1 = arith.extui %0 : i1 to i32
    %c0_i32_0 = arith.constant 0 : i32
    %2 = arith.cmpi ne, %1, %c0_i32_0 : i32
    scf.if %2 {
      %cst_9 = arith.constant 0.000000e+00 : f32
      %12 = vector.broadcast %cst_9 : f32 to vector<128x128xf32>
      %c0_10 = arith.constant 0 : index
      %c0_11 = arith.constant 0 : index
      %13 = vector.load %arg7[%c0_10, %c0_11] : memref<128x128xf32, #tpu.memory_space<vmem>>, vector<128x128xf32>
      tpu.vector_store %arg7[%c0_10, %c0_11], %12 {strides = array<i32>} : memref<128x128xf32, #tpu.memory_space<vmem>>, vector<128x128xf32>,
    } else {
    }
    %c0 = arith.constant 0 : index
    %c0_1 = arith.constant 0 : index
    %3 = vector.load %arg7[%c0, %c0_1] : memref<128x128xf32, #tpu.memory_space<vmem>>, vector<128x128xf32>
    %c0_2 = arith.constant 0 : index
    %c0_3 = arith.constant 0 : index
    %4 = vector.load %arg3[%c0_2, %c0_3] : memref<128x512xbf16, #tpu.memory_space<vmem>>, vector<128x512xbf16>
    %c0_4 = arith.constant 0 : index
    %c0_5 = arith.constant 0 : index
    %5 = vector.load %arg4[%c0_4, %c0_5] : memref<512x128xbf16, #tpu.memory_space<vmem>>, vector<512x128xbf16>
    %cst = arith.constant dense<0.000000e+00> : vector<128x128xf32>
    %6 = tpu.matmul %4, %5, %cst {dimension_numbers = #tpu.dot_dimension_numbers<[1], [0], [0], [1], [0, 0, 1, 1], [], []>} : vector<128x512xbf16>, vector<512x128xbf16>, vector<128x128xf32> -> vector<128x128xf32>
    %7 = arith.addf %3, %6 : vector<128x128xf32>
    %c0_6 = arith.constant 0 : index
    %c0_7 = arith.constant 0 : index
    %8 = vector.load %arg7[%c0_6, %c0_7] : memref<128x128xf32, #tpu.memory_space<vmem>>, vector<128x128xf32>
    tpu.vector_store %arg7[%c0_6, %c0_7], %7 {strides = array<i32>} : memref<128x128xf32, #tpu.memory_space<vmem>>, vector<128x128xf32>,
    %c1_i32 = arith.constant 1 : i32
    %9 = arith.cmpi eq, %arg2, %c1_i32 : i32
    %10 = arith.extui %9 : i1 to i32
    %c0_i32_8 = arith.constant 0 : i32
    %11 = arith.cmpi ne, %10, %c0_i32_8 : i32
    scf.if %11 {
      %c0_9 = arith.constant 0 : index
      %c0_10 = arith.constant 0 : index
      %12 = vector.load %arg7[%c0_9, %c0_10] : memref<128x128xf32, #tpu.memory_space<vmem>>, vector<128x128xf32>
      %c0_11 = arith.constant 0 : index
      %c0_12 = arith.constant 0 : index
      %13 = vector.load %arg5[%c0_11, %c0_12] : memref<1x128xf32, #tpu.memory_space<vmem>>, vector<1x128xf32>
      %14 = vector.broadcast %13 : vector<1x128xf32> to vector<128x128xf32>
      %15 = arith.addf %12, %14 : vector<128x128xf32>
      %c0_13 = arith.constant 0 : index
      %c0_14 = arith.constant 0 : index
      %16 = vector.load %arg6[%c0_13, %c0_14] : memref<128x128xf32, #tpu.memory_space<vmem>>, vector<128x128xf32>
      tpu.vector_store %arg6[%c0_13, %c0_14], %15 {strides = array<i32>} : memref<128x128xf32, #tpu.memory_space<vmem>>, vector<128x128xf32>,
    } else {
    }
    return
  }
  func.func @transform_0(%arg0: i32, %arg1: i32, %arg2: i32) -> (i32, i32) {
    %c0_i32 = arith.constant 0 : i32
    return %arg0, %arg2 : i32, i32
  }
  func.func @transform_1(%arg0: i32, %arg1: i32, %arg2: i32) -> (i32, i32) {
    %c0_i32 = arith.constant 0 : i32
    return %arg2, %arg1 : i32, i32
  }
  func.func @transform_2(%arg0: i32, %arg1: i32, %arg2: i32) -> (i32, i32) {
    %c0_i32 = arith.constant 0 : i32
    %c0_i32_0 = arith.constant 0 : i32
    return %c0_i32, %arg1 : i32, i32
  }
  func.func @transform_3(%arg0: i32, %arg1: i32, %arg2: i32) -> (i32, i32) {
    %c0_i32 = arith.constant 0 : i32
    return %arg0, %arg1 : i32, i32
  }
}

</mosaic_0001>

<llo_original>
// kernel: model_wrapper_forward.1
$region0: #{model_wrapper_forward.1}
  #allocation0 [shape = 'u32[]', space=smem, size = 0x4, offset = 0x4, fixed_abs, tag = 'smem constant byte address 0x4 - core index']
  #allocation1 [shape = 'u32[72,128]{1,0:T(1,128)}', space=vmem, size = 0x9000, scoped, tag = 'internal scratch']
  #allocation2 [shape = 'f32[128,128]{1,0:T(8,128)}', space=vmem, size = 0x10000, scoped, tag = 'scratch operand']
  %s0 = inlined_call_operand.vmem [shape: bf16[128,1024], index: 0, kind: input, shape index: {}]
  %s1 = inlined_call_operand.vmem [shape: bf16[1024,128], index: 1, kind: input, shape index: {}]
  %s2 = inlined_call_operand.vmem [shape: f32[1,128], index: 2, kind: input, shape index: {}]
  %s3 = inlined_call_operand.vmem [shape: f32[128,128], index: 3, kind: output, shape index: {}]
  %s4 = sld [smem:[#allocation0]]
  $region76: #{model_wrapper_forward.1} parent=0
    _
  %s6 = ssub.s32 1, %s4
  %s7 = scalar_select 0, %s6, %s4
  $region1: #{model_wrapper_forward.1} parent=0
    #allocation3 [shape = 'u8[262144]{0}', space=vmem, size = 0x40000, scoped, tag = 'input window, operand 0']
    loop: start=0, step=1, limit=4
    $region2: #{model_wrapper_forward.1} parent=1 // loop_pre_header
      _
    $region3: #{model_wrapper_forward.1} parent=1 // loop_header
      %s9 = sphi 0, %s13
      %p10 = scmp.ge.s32.totalorder %s9, 4
      %s16 = sphi 0, %s35
      %s17 = sphi 0, %s31
      %s18 = sphi 0, %s27
      %s19 = sphi 0, %s16
      %s20 = sphi 0, %s17
      %s21 = sphi 0, %s18
      %s22 = sphi 0, %s19
      %s23 = sphi 0, %s20
      %s24 = sphi 0, %s21
      %s40 = sphi 0, %s42
      %s43 = sphi 0, %s40
      %s44 = sphi 0, %s43
      %s60 = sphi 0, %s44
      %s68 = sphi 0, %s70
      %s71 = sphi 0, %s68
      %s72 = sphi 0, %s71
      %s88 = sphi 0, %s72
      %s94 = sphi 0, %s96
      %s97 = sphi 0, %s94
      %s98 = sphi 0, %s97
      %s114 = sphi 0, %s98
      %s122 = sphi 0, %s124
      %s125 = sphi 0, %s122
      %s126 = sphi 0, %s125
      %s142 = sphi 0, %s126
    $region4: #{model_wrapper_forward.1} parent=1 // loop_header_branch
      %12 = sbr.rel (%p10) target = $region8
    $region5: #{model_wrapper_forward.1} parent=1 // loop_body
      %s14 = ssub.s32 %s9, 1
      %s15 = ssub.s32 %s9, 2
      %s25 = sadd.s32 1, %s18
      %p26 = scmp.ge.s32.totalorder %s25, 2
      %s27 = scalar_select %p26, 0, %s25
      %s28 = sadd.s32 1, %s17
      %s29 = scalar_select %p26, %s28, %s17
      %p30 = scmp.ge.s32.totalorder %s29, 1
      %s31 = scalar_select %p30, 0, %s29
      %s32 = sadd.s32 1, %s16
      %s33 = scalar_select %p30, %s32, %s16
      %p34 = scmp.ge.s32.totalorder %s33, 1
      %s35 = scalar_select %p34, 0, %s33
      %s36 = ssub.s32 %s16, %s35
      %s37 = ssub.s32 %s18, %s27
      %s38 = sor.u32 %s36, %s37
      %p39 = scmp.eq.s32.totalorder %s38, 0
      %s41 = sadd.s32 %s40, 1
      %s42 = scalar_select %p39, %s40, %s41
      %p45 = pneg %p39
      %p46 = scmp.eq.s32.totalorder %s9, 1
      %p47 = por %p45, %p46
      %p48 = scmp.ne.s32.totalorder %s40, %s43
      %p49 = scmp.eq.s32.totalorder %s9, 0
      %p50 = por %p48, %p49
      %p51 = scmp.ne.s32.totalorder %s40, %s43
      %p52 = scmp.eq.s32.totalorder %s14, 1
      %p53 = por %p51, %p52
      %p54 = scmp.ne.s32.totalorder %s43, %s44
      %p55 = scmp.eq.s32.totalorder %s14, 0
      %p56 = por %p54, %p55
      %p57 = scmp.ne.s32.totalorder %s43, %s44
      %p58 = scmp.eq.s32.totalorder %s15, 1
      %p59 = por %p57, %p58
      %p61 = scmp.ne.s32.totalorder %s44, %s60
      %p62 = scmp.eq.s32.totalorder %s15, 0
      %p63 = por %p61, %p62
      %s64 = ssub.s32 %s18, %s27
      %s65 = ssub.s32 %s17, %s31
      %s66 = sor.u32 %s64, %s65
      %p67 = scmp.eq.s32.totalorder %s66, 0
      %s69 = sadd.s32 %s68, 1
      %s70 = scalar_select %p67, %s68, %s69
      %p73 = pneg %p67
      %p74 = scmp.eq.s32.totalorder %s9, 1
      %p75 = por %p73, %p74
      %p76 = scmp.ne.s32.totalorder %s68, %s71
      %p77 = scmp.eq.s32.totalorder %s9, 0
      %p78 = por %p76, %p77
      %p79 = scmp.ne.s32.totalorder %s68, %s71
      %p80 = scmp.eq.s32.totalorder %s14, 1
      %p81 = por %p79, %p80
      %p82 = scmp.ne.s32.totalorder %s71, %s72
      %p83 = scmp.eq.s32.totalorder %s14, 0
      %p84 = por %p82, %p83
      %p85 = scmp.ne.s32.totalorder %s71, %s72
      %p86 = scmp.eq.s32.totalorder %s15, 1
      %p87 = por %p85, %p86
      %p89 = scmp.ne.s32.totalorder %s72, %s88
      %p90 = scmp.eq.s32.totalorder %s15, 0
      %p91 = por %p89, %p90
      %s92 = ssub.s32 %s17, %s31
      %p93 = scmp.eq.s32.totalorder %s92, 0
      %s95 = sadd.s32 %s94, 1
      %s96 = scalar_select %p93, %s94, %s95
      %p99 = pneg %p93
      %p100 = scmp.eq.s32.totalorder %s9, 1
      %p101 = por %p99, %p100
      %p102 = scmp.ne.s32.totalorder %s94, %s97
      %p103 = scmp.eq.s32.totalorder %s9, 0
      %p104 = por %p102, %p103
      %p105 = scmp.ne.s32.totalorder %s94, %s97
      %p106 = scmp.eq.s32.totalorder %s14, 1
      %p107 = por %p105, %p106
      %p108 = scmp.ne.s32.totalorder %s97, %s98
      %p109 = scmp.eq.s32.totalorder %s14, 0
      %p110 = por %p108, %p109
      %p111 = scmp.ne.s32.totalorder %s97, %s98
      %p112 = scmp.eq.s32.totalorder %s15, 1
      %p113 = por %p111, %p112
      %p115 = scmp.ne.s32.totalorder %s98, %s114
      %p116 = scmp.eq.s32.totalorder %s15, 0
      %p117 = por %p115, %p116
      %s118 = ssub.s32 %s16, %s35
      %s119 = ssub.s32 %s17, %s31
      %s120 = sor.u32 %s118, %s119
      %p121 = scmp.eq.s32.totalorder %s120, 0
      %s123 = sadd.s32 %s122, 1
      %s124 = scalar_select %p121, %s122, %s123
      %p127 = pneg %p121
      %p128 = scmp.eq.s32.totalorder %s9, 1
      %p129 = por %p127, %p128
      %p130 = scmp.ne.s32.totalorder %s122, %s125
      %p131 = scmp.eq.s32.totalorder %s9, 0
      %p132 = por %p130, %p131
      %p133 = scmp.ne.s32.totalorder %s122, %s125
      %p134 = scmp.eq.s32.totalorder %s14, 1
      %p135 = por %p133, %p134
      %p136 = scmp.ne.s32.totalorder %s125, %s126
      %p137 = scmp.eq.s32.totalorder %s14, 0
      %p138 = por %p136, %p137
      %p139 = scmp.ne.s32.totalorder %s125, %s126
      %p140 = scmp.eq.s32.totalorder %s15, 1
      %p141 = por %p139, %p140
      %p143 = scmp.ne.s32.totalorder %s126, %s142
      %p144 = scmp.eq.s32.totalorder %s15, 0
      %p145 = por %p143, %p144
      %p146 = scmp.le.s32.totalorder 1, %s9
      %p147 = scmp.lt.s32.totalorder %s9, 3
      %p148 = pnand %p146, %p147
      %p149 = pneg %p148
      // Predicated region
      $region9: #{model_wrapper_forward.1} parent=5 // pred_check
        _
      $region10: #{model_wrapper_forward.1} parent=5 // pred_check_branch
        %151 = sbr.rel (%p148) target = $region12
      $region11: #{model_wrapper_forward.1} parent=5 // pred_region
        %s152 = ssub.s32 %s9, 1
        // Predicated region
        $region13: #{model_wrapper_forward.1} parent=11 // pred_check
          %p153 = pneg %p110
        $region14: #{model_wrapper_forward.1} parent=11 // pred_check_branch
          %155 = sbr.rel (%p153) target = $region16
        $region15: #{model_wrapper_forward.1} parent=11 // pred_region
          %p156 = scmp.lt.s32.totalorder %s20, 0
          %s157 = scalar_select %p156, %s20, 0
          %s158 = scalar_lea.vmem %s2, %s157
        $region16: #{model_wrapper_forward.1} parent=11 // pred_fallthru
          _
      $region12: #{model_wrapper_forward.1} parent=5 // pred_fallthru
        _
      %p159 = scmp.lt.s32.totalorder %s9, 2
      // Predicated region
      $region17: #{model_wrapper_forward.1} parent=5 // pred_check
        %p160 = pneg %p159
      $region18: #{model_wrapper_forward.1} parent=5 // pred_check_branch
        %162 = sbr.rel (%p160) target = $region20
      $region19: #{model_wrapper_forward.1} parent=5 // pred_region
        // Predicated region
        $region21: #{model_wrapper_forward.1} parent=19 // pred_check
          %p163 = pneg %p50
        $region22: #{model_wrapper_forward.1} parent=19 // pred_check_branch
          %165 = sbr.rel (%p163) target = $region24
        $region23: #{model_wrapper_forward.1} parent=19 // pred_region
          %s166 = sand.u32 %s40, 1
          %s167 = sand.u32 %s40, 1
          %s168 = smul.addr %s167, 256
          %s169 = scalar_lea.vmem [#allocation3], %s168
          %s170 = smul.u32 16, %s16
          %s171 = smul.u32 4, %s18
          %s172 = smul.addr %s170, 8
          %s173 = sadd.s32 %s171, %s172
          %s174 = smul.addr %s173, 4
          %s175 = scalar_lea.vmem %s0, %s174
          // Predicated region
          $region25: #{model_wrapper_forward.1} parent=23 // pred_check
            _
          $region26: #{model_wrapper_forward.1} parent=23 // pred_check_branch
            %177 = sbr.rel (0) target = $region28
          $region27: #{model_wrapper_forward.1} parent=23 // pred_region
            // Predicated region
            $region29: #{model_wrapper_forward.1} parent=27 // pred_check
              _
            $region30: #{model_wrapper_forward.1} parent=27 // pred_check_branch
              %179 = sbr.rel (0) target = $region32
            $region31: #{model_wrapper_forward.1} parent=27 // pred_region
              loop: start=0, step=1, limit=1
              $region33: #{model_wrapper_forward.1} parent=31 // loop_pre_header
                _
              $region34: #{model_wrapper_forward.1} parent=31 // loop_header
                %s181 = sphi 0, %s185
                %p182 = scmp.ge.s32.totalorder %s181, 1
                %s186 = sphi %s175, %s175
                %s187 = sphi %s169, %s169
              $region35: #{model_wrapper_forward.1} parent=31 // loop_header_branch
                %184 = sbr.rel (%p182) target = $region39
              $region36: #{model_wrapper_forward.1} parent=31 // loop_body
                %v188 = vld [vmem:[%s186] sm:$0xff]
                %189 = vst [vmem:[%s187] sm:$0xff] %v188
                %v190 = vld [vmem:[%s186 + $0x8] sm:$0xff]
                %191 = vst [vmem:[%s187 + $0x8] sm:$0xff] %v190
                %v192 = vld [vmem:[%s186 + $0x20] sm:$0xff]
                %193 = vst [vmem:[%s187 + $0x10] sm:$0xff] %v192
                %v194 = vld [vmem:[%s186 + $0x28] sm:$0xff]
                %195 = vst [vmem:[%s187 + $0x18] sm:$0xff] %v194
                %v196 = vld [vmem:[%s186 + $0x40] sm:$0xff]
                %197 = vst [vmem:[%s187 + $0x20] sm:$0xff] %v196
                %v198 = vld [vmem:[%s186 + $0x48] sm:$0xff]
                %199 = vst [vmem:[%s187 + $0x28] sm:$0xff] %v198
                %v200 = vld [vmem:[%s186 + $0x60] sm:$0xff]
                %201 = vst [vmem:[%s187 + $0x30] sm:$0xff] %v200
                %v202 = vld [vmem:[%s186 + $0x68] sm:$0xff]
                %203 = vst [vmem:[%s187 + $0x38] sm:$0xff] %v202
                %v204 = vld [vmem:[%s186 + $0x80] sm:$0xff]
                %205 = vst [vmem:[%s187 + $0x40] sm:$0xff] %v204
                %v206 = vld [vmem:[%s186 + $0x88] sm:$0xff]
                %207 = vst [vmem:[%s187 + $0x48] sm:$0xff] %v206
                %v208 = vld [vmem:[%s186 + $0xa0] sm:$0xff]
                %209 = vst [vmem:[%s187 + $0x50] sm:$0xff] %v208
                %v210 = vld [vmem:[%s186 + $0xa8] sm:$0xff]
                %211 = vst [vmem:[%s187 + $0x58] sm:$0xff] %v210
                %v212 = vld [vmem:[%s186 + $0xc0] sm:$0xff]
                %213 = vst [vmem:[%s187 + $0x60] sm:$0xff] %v212
                %v214 = vld [vmem:[%s186 + $0xc8] sm:$0xff]
                %215 = vst [vmem:[%s187 + $0x68] sm:$0xff] %v214
                %v216 = vld [vmem:[%s186 + $0xe0] sm:$0xff]
                %217 = vst [vmem:[%s187 + $0x70] sm:$0xff] %v216
                %v218 = vld [vmem:[%s186 + $0xe8] sm:$0xff]
                %219 = vst [vmem:[%s187 + $0x78] sm:$0xff] %v218
                %v220 = vld [vmem:[%s186 + $0x100] sm:$0xff]
                %221 = vst [vmem:[%s187 + $0x80] sm:$0xff] %v220
                %v222 = vld [vmem:[%s186 + $0x108] sm:$0xff]
                %223 = vst [vmem:[%s187 + $0x88] sm:$0xff] %v222
                %v224 = vld [vmem:[%s186 + $0x120] sm:$0xff]
                %225 = vst [vmem:[%s187 + $0x90] sm:$0xff] %v224
                %v226 = vld [vmem:[%s186 + $0x128] sm:$0xff]
                %227 = vst [vmem:[%s187 + $0x98] sm:$0xff] %v226
                %v228 = vld [vmem:[%s186 + $0x140] sm:$0xff]
                %229 = vst [vmem:[%s187 + $0xa0] sm:$0xff] %v228
                %v230 = vld [vmem:[%s186 + $0x148] sm:$0xff]
                %231 = vst [vmem:[%s187 + $0xa8] sm:$0xff] %v230
                %v232 = vld [vmem:[%s186 + $0x160] sm:$0xff]
                %233 = vst [vmem:[%s187 + $0xb0] sm:$0xff] %v232
                %v234 = vld [vmem:[%s186 + $0x168] sm:$0xff]
                %235 = vst [vmem:[%s187 + $0xb8] sm:$0xff] %v234
                %v236 = vld [vmem:[%s186 + $0x180] sm:$0xff]
                %237 = vst [vmem:[%s187 + $0xc0] sm:$0xff] %v236
                %v238 = vld [vmem:[%s186 + $0x188] sm:$0xff]
                %239 = vst [vmem:[%s187 + $0xc8] sm:$0xff] %v238
                %v240 = vld [vmem:[%s186 + $0x1a0] sm:$0xff]
                %241 = vst [vmem:[%s187 + $0xd0] sm:$0xff] %v240
                %v242 = vld [vmem:[%s186 + $0x1a8] sm:$0xff]
                %243 = vst [vmem:[%s187 + $0xd8] sm:$0xff] %v242
                %v244 = vld [vmem:[%s186 + $0x1c0] sm:$0xff]
                %245 = vst [vmem:[%s187 + $0xe0] sm:$0xff] %v244
                %v246 = vld [vmem:[%s186 + $0x1c8] sm:$0xff]
                %247 = vst [vmem:[%s187 + $0xe8] sm:$0xff] %v246
                %v248 = vld [vmem:[%s186 + $0x1e0] sm:$0xff]
                %249 = vst [vmem:[%s187 + $0xf0] sm:$0xff] %v248
                %v250 = vld [vmem:[%s186 + $0x1e8] sm:$0xff]
                %251 = vst [vmem:[%s187 + $0xf8] sm:$0xff] %v250
              $region37: #{model_wrapper_forward.1} parent=31 // loop_footer
                %s185 = sadd.s32 1, %s181
              $region38: #{model_wrapper_forward.1} parent=31 // loop_footer_branch
                %180 = sbr.rel target = $region34
              $region39: #{model_wrapper_forward.1} parent=31 // loop_exit
                _
            $region32: #{model_wrapper_forward.1} parent=27 // pred_fallthru
              _
            // Predicated region
            $region40: #{model_wrapper_forward.1} parent=27 // pred_check
              _
            $region41: #{model_wrapper_forward.1} parent=27 // pred_check_branch
              %253 = sbr.rel target = $region43
            $region42: #{model_wrapper_forward.1} parent=27 // pred_region
              _
            $region43: #{model_wrapper_forward.1} parent=27 // pred_fallthru
              _
          $region28: #{model_wrapper_forward.1} parent=23 // pred_fallthru
            _
          %254 = vnop
        $region24: #{model_wrapper_forward.1} parent=19 // pred_fallthru
          _
        // Predicated region
        $region44: #{model_wrapper_forward.1} parent=19 // pred_check
          %p255 = pneg %p78
        $region45: #{model_wrapper_forward.1} parent=19 // pred_check_branch
          %257 = sbr.rel (%p255) target = $region47
        $region46: #{model_wrapper_forward.1} parent=19 // pred_region
          %s258 = smul.u32 64, %s18
          %p259 = scmp.lt.s32.totalorder %s258, 127
          %s260 = scalar_select %p259, %s258, 127
          %p261 = scmp.lt.s32.totalorder %s17, 0
          %s262 = scalar_select %p261, %s17, 0
          %s263 = sadd.s32 %s262, %s260
          %s264 = smul.addr %s263, 4
          %s265 = scalar_lea.vmem %s1, %s264
          %s266 = smul.u32 64, %s18
        $region47: #{model_wrapper_forward.1} parent=19 // pred_fallthru
          _
      $region20: #{model_wrapper_forward.1} parent=5 // pred_fallthru
        _
      %p267 = scmp.le.s32.totalorder 1, %s9
      %p268 = scmp.lt.s32.totalorder %s9, 3
      %p269 = pnand %p267, %p268
      %p270 = pneg %p269
      // Predicated region
      $region48: #{model_wrapper_forward.1} parent=5 // pred_check
        _
      $region49: #{model_wrapper_forward.1} parent=5 // pred_check_branch
        %272 = sbr.rel (%p269) target = $region51
      $region50: #{model_wrapper_forward.1} parent=5 // pred_region
        %s273 = ssub.s32 %s9, 1
        %s274 = sand.u32 %s43, 1
        %s275 = sand.u32 %s43, 1
        %s276 = smul.addr %s275, 256
        %s277 = scalar_lea.vmem [#allocation3], %s276
        // Predicated region
        $region52: #{model_wrapper_forward.1} parent=50 // pred_check
          %p278 = pneg %p56
        $region53: #{model_wrapper_forward.1} parent=50 // pred_check_branch
          %280 = sbr.rel (%p278) target = $region55
        $region54: #{model_wrapper_forward.1} parent=50 // pred_region
          _
        $region55: #{model_wrapper_forward.1} parent=50 // pred_fallthru
          _
        %s281 = sand.u32 %s43, 1
        %s282 = sand.u32 %s43, 1
        %s283 = smul.addr %s282, 256
        %s284 = scalar_lea.vmem [#allocation3], %s283
        %p285 = pneg %p56
        %p286 = pneg %p53
        %s287 = smul.u32 64, %s21
        %p288 = scmp.lt.s32.totalorder %s287, 127
        %s289 = scalar_select %p288, %s287, 127
        %p290 = scmp.lt.s32.totalorder %s20, 0
        %s291 = scalar_select %p290, %s20, 0
        %s292 = sadd.s32 %s291, %s289
        %s293 = smul.addr %s292, 4
        %s294 = scalar_lea.vmem %s1, %s293
        %p295 = pneg %p84
        %p296 = pneg %p81
        %p297 = scmp.lt.s32.totalorder %s20, 0
        %s298 = scalar_select %p297, %s20, 0
        %s299 = scalar_lea.vmem %s2, %s298
        %p300 = pneg %p110
        %p301 = pneg %p107
        %p302 = pneg %p138
        %p303 = pneg %p135
        %s304 = smul.u32 16, %s19
        %p305 = scmp.lt.s32.totalorder %s304, 15
        %s306 = scalar_select %p305, %s304, 15
        %p307 = scmp.lt.s32.totalorder %s20, 0
        %s308 = scalar_select %p307, %s20, 0
        %s309 = sadd.s32 %s308, %s306
        %s310 = smul.addr %s309, 8
        %s311 = scalar_lea.vmem %s3, %s310
        %s312 = smul.u32 16, %s19
        %s313 = smul.u32 4, %s21
        %s314 = smul.u32 64, %s21
        %p315 = scmp.lt.s32.totalorder %s314, 127
        %s316 = scalar_select %p315, %s314, 127
        %p317 = scmp.lt.s32.totalorder %s20, 0
        %s318 = scalar_select %p317, %s20, 0
        %s319 = sadd.s32 %s318, %s316
        %s320 = smul.addr %s319, 4
        %s321 = scalar_lea.vmem %s1, %s320
        %s322 = smul.u32 64, %s21
        %p323 = scmp.lt.s32.totalorder %s20, 0
        %s324 = scalar_select %p323, %s20, 0
        %s325 = scalar_lea.vmem %s2, %s324
        %s326 = smul.u32 16, %s19
        %p327 = scmp.lt.s32.totalorder %s326, 15
        %s328 = scalar_select %p327, %s326, 15
        %p329 = scmp.lt.s32.totalorder %s20, 0
        %s330 = scalar_select %p329, %s20, 0
        %s331 = sadd.s32 %s330, %s328
        %s332 = smul.addr %s331, 8
        %s333 = scalar_lea.vmem %s3, %s332
        %s334 = smul.u32 16, %s19
        %p335 = scmp.eq.s32.totalorder %s21, 0
        // Predicated region
        $region56: #{model_wrapper_forward.1} parent=50 // pred_check
          %p336 = pneg %p335
        $region57: #{model_wrapper_forward.1} parent=50 // pred_check_branch
          %338 = sbr.rel (%p336) target = $region59
        $region58: #{model_wrapper_forward.1} parent=50 // pred_region
          %339 = vst [vmem:[#allocation2] sm:$0xff] 0.0
          %340 = vst [vmem:[#allocation2 + $0x8] sm:$0xff] 0.0
          %341 = vst [vmem:[#allocation2 + $0x10] sm:$0xff] 0.0
          %342 = vst [vmem:[#allocation2 + $0x18] sm:$0xff] 0.0
          %343 = vst [vmem:[#allocation2 + $0x20] sm:$0xff] 0.0
          %344 = vst [vmem:[#allocation2 + $0x28] sm:$0xff] 0.0
          %345 = vst [vmem:[#allocation2 + $0x30] sm:$0xff] 0.0
          %346 = vst [vmem:[#allocation2 + $0x38] sm:$0xff] 0.0
          %347 = vst [vmem:[#allocation2 + $0x40] sm:$0xff] 0.0
          %348 = vst [vmem:[#allocation2 + $0x48] sm:$0xff] 0.0
          %349 = vst [vmem:[#allocation2 + $0x50] sm:$0xff] 0.0
          %350 = vst [vmem:[#allocation2 + $0x58] sm:$0xff] 0.0
          %351 = vst [vmem:[#allocation2 + $0x60] sm:$0xff] 0.0
          %352 = vst [vmem:[#allocation2 + $0x68] sm:$0xff] 0.0
          %353 = vst [vmem:[#allocation2 + $0x70] sm:$0xff] 0.0
          %354 = vst [vmem:[#allocation2 + $0x78] sm:$0xff] 0.0
        $region59: #{model_wrapper_forward.1} parent=50 // pred_fallthru
          _
        %v355 = vld [vmem:[#allocation2] sm:$0xff]
        %v356 = vld [vmem:[#allocation2 + $0x8] sm:$0xff]
        %v357 = vld [vmem:[#allocation2 + $0x10] sm:$0xff]
        %v358 = vld [vmem:[#allocation2 + $0x18] sm:$0xff]
        %v359 = vld [vmem:[#allocation2 + $0x20] sm:$0xff]
        %v360 = vld [vmem:[#allocation2 + $0x28] sm:$0xff]
        %v361 = vld [vmem:[#allocation2 + $0x30] sm:$0xff]
        %v362 = vld [vmem:[#allocation2 + $0x38] sm:$0xff]
        %v363 = vld [vmem:[#allocation2 + $0x40] sm:$0xff]
        %v364 = vld [vmem:[#allocation2 + $0x48] sm:$0xff]
        %v365 = vld [vmem:[#allocation2 + $0x50] sm:$0xff]
        %v366 = vld [vmem:[#allocation2 + $0x58] sm:$0xff]
        %v367 = vld [vmem:[#allocation2 + $0x60] sm:$0xff]
        %v368 = vld [vmem:[#allocation2 + $0x68] sm:$0xff]
        %v369 = vld [vmem:[#allocation2 + $0x70] sm:$0xff]
        %v370 = vld [vmem:[#allocation2 + $0x78] sm:$0xff]
        %v371 = vld [vmem:[%s277] sm:$0xff]
        %v372 = vld [vmem:[%s277 + $0x8] sm:$0xff]
        %v373 = vld [vmem:[%s277 + $0x10] sm:$0xff]
        %v374 = vld [vmem:[%s277 + $0x18] sm:$0xff]
        %v375 = vld [vmem:[%s277 + $0x20] sm:$0xff]
        %v376 = vld [vmem:[%s277 + $0x28] sm:$0xff]
        %v377 = vld [vmem:[%s277 + $0x30] sm:$0xff]
        %v378 = vld [vmem:[%s277 + $0x38] sm:$0xff]
        %v379 = vld [vmem:[%s277 + $0x40] sm:$0xff]
        %v380 = vld [vmem:[%s277 + $0x48] sm:$0xff]
        %v381 = vld [vmem:[%s277 + $0x50] sm:$0xff]
        %v382 = vld [vmem:[%s277 + $0x58] sm:$0xff]
        %v383 = vld [vmem:[%s277 + $0x60] sm:$0xff]
        %v384 = vld [vmem:[%s277 + $0x68] sm:$0xff]
        %v385 = vld [vmem:[%s277 + $0x70] sm:$0xff]
        %v386 = vld [vmem:[%s277 + $0x78] sm:$0xff]
        %v387 = vld [vmem:[%s277 + $0x80] sm:$0xff]
        %v388 = vld [vmem:[%s277 + $0x88] sm:$0xff]
        %v389 = vld [vmem:[%s277 + $0x90] sm:$0xff]
        %v390 = vld [vmem:[%s277 + $0x98] sm:$0xff]
        %v391 = vld [vmem:[%s277 + $0xa0] sm:$0xff]
        %v392 = vld [vmem:[%s277 + $0xa8] sm:$0xff]
        %v393 = vld [vmem:[%s277 + $0xb0] sm:$0xff]
        %v394 = vld [vmem:[%s277 + $0xb8] sm:$0xff]
        %v395 = vld [vmem:[%s277 + $0xc0] sm:$0xff]
        %v396 = vld [vmem:[%s277 + $0xc8] sm:$0xff]
        %v397 = vld [vmem:[%s277 + $0xd0] sm:$0xff]
        %v398 = vld [vmem:[%s277 + $0xd8] sm:$0xff]
        %v399 = vld [vmem:[%s277 + $0xe0] sm:$0xff]
        %v400 = vld [vmem:[%s277 + $0xe8] sm:$0xff]
        %v401 = vld [vmem:[%s277 + $0xf0] sm:$0xff]
        %v402 = vld [vmem:[%s277 + $0xf8] sm:$0xff]
        %v403 = vld [vmem:[%s321] sm:$0xf]
        %v404 = vld [vmem:[%s321 + $0x4] sm:$0xf]
        %v405 = vld [vmem:[%s321 + $0x8] sm:$0xf]
        %v406 = vld [vmem:[%s321 + $0xc] sm:$0xf]
        %v407 = vld [vmem:[%s321 + $0x10] sm:$0xf]
        %v408 = vld [vmem:[%s321 + $0x14] sm:$0xf]
        %v409 = vld [vmem:[%s321 + $0x18] sm:$0xf]
        %v410 = vld [vmem:[%s321 + $0x1c] sm:$0xf]
        %v411 = vld [vmem:[%s321 + $0x20] sm:$0xf]
        %v412 = vld [vmem:[%s321 + $0x24] sm:$0xf]
        %v413 = vld [vmem:[%s321 + $0x28] sm:$0xf]
        %v414 = vld [vmem:[%s321 + $0x2c] sm:$0xf]
        %v415 = vld [vmem:[%s321 + $0x30] sm:$0xf]
        %v416 = vld [vmem:[%s321 + $0x34] sm:$0xf]
        %v417 = vld [vmem:[%s321 + $0x38] sm:$0xf]
        %v418 = vld [vmem:[%s321 + $0x3c] sm:$0xf]
        %v419 = vld [vmem:[%s321 + $0x40] sm:$0xf]
        %v420 = vld [vmem:[%s321 + $0x44] sm:$0xf]
        %v421 = vld [vmem:[%s321 + $0x48] sm:$0xf]
        %v422 = vld [vmem:[%s321 + $0x4c] sm:$0xf]
        %v423 = vld [vmem:[%s321 + $0x50] sm:$0xf]
        %v424 = vld [vmem:[%s321 + $0x54] sm:$0xf]
        %v425 = vld [vmem:[%s321 + $0x58] sm:$0xf]
        %v426 = vld [vmem:[%s321 + $0x5c] sm:$0xf]
        %v427 = vld [vmem:[%s321 + $0x60] sm:$0xf]
        %v428 = vld [vmem:[%s321 + $0x64] sm:$0xf]
        %v429 = vld [vmem:[%s321 + $0x68] sm:$0xf]
        %v430 = vld [vmem:[%s321 + $0x6c] sm:$0xf]
        %v431 = vld [vmem:[%s321 + $0x70] sm:$0xf]
        %v432 = vld [vmem:[%s321 + $0x74] sm:$0xf]
        %v433 = vld [vmem:[%s321 + $0x78] sm:$0xf]
        %v434 = vld [vmem:[%s321 + $0x7c] sm:$0xf]
        %v435 = vld [vmem:[%s321 + $0x80] sm:$0xf]
        %v436 = vld [vmem:[%s321 + $0x84] sm:$0xf]
        %v437 = vld [vmem:[%s321 + $0x88] sm:$0xf]
        %v438 = vld [vmem:[%s321 + $0x8c] sm:$0xf]
        %v439 = vld [vmem:[%s321 + $0x90] sm:$0xf]
        %v440 = vld [vmem:[%s321 + $0x94] sm:$0xf]
        %v441 = vld [vmem:[%s321 + $0x98] sm:$0xf]
        %v442 = vld [vmem:[%s321 + $0x9c] sm:$0xf]
        %v443 = vld [vmem:[%s321 + $0xa0] sm:$0xf]
        %v444 = vld [vmem:[%s321 + $0xa4] sm:$0xf]
        %v445 = vld [vmem:[%s321 + $0xa8] sm:$0xf]
        %v446 = vld [vmem:[%s321 + $0xac] sm:$0xf]
        %v447 = vld [vmem:[%s321 + $0xb0] sm:$0xf]
        %v448 = vld [vmem:[%s321 + $0xb4] sm:$0xf]
        %v449 = vld [vmem:[%s321 + $0xb8] sm:$0xf]
        %v450 = vld [vmem:[%s321 + $0xbc] sm:$0xf]
        %v451 = vld [vmem:[%s321 + $0xc0] sm:$0xf]
        %v452 = vld [vmem:[%s321 + $0xc4] sm:$0xf]
        %v453 = vld [vmem:[%s321 + $0xc8] sm:$0xf]
        %v454 = vld [vmem:[%s321 + $0xcc] sm:$0xf]
        %v455 = vld [vmem:[%s321 + $0xd0] sm:$0xf]
        %v456 = vld [vmem:[%s321 + $0xd4] sm:$0xf]
        %v457 = vld [vmem:[%s321 + $0xd8] sm:$0xf]
        %v458 = vld [vmem:[%s321 + $0xdc] sm:$0xf]
        %v459 = vld [vmem:[%s321 + $0xe0] sm:$0xf]
        %v460 = vld [vmem:[%s321 + $0xe4] sm:$0xf]
        %v461 = vld [vmem:[%s321 + $0xe8] sm:$0xf]
        %v462 = vld [vmem:[%s321 + $0xec] sm:$0xf]
        %v463 = vld [vmem:[%s321 + $0xf0] sm:$0xf]
        %v464 = vld [vmem:[%s321 + $0xf4] sm:$0xf]
        %v465 = vld [vmem:[%s321 + $0xf8] sm:$0xf]
        %v466 = vld [vmem:[%s321 + $0xfc] sm:$0xf]
        %v499 = vunpack.c.l.b16 %v371
        %v500 = vunpack.c.h.b16 %v371
        %v501 = vunpack.c.l.b16 %v372
        %v502 = vunpack.c.h.b16 %v372
        %v503 = vunpack.c.l.b16 %v373
        %v504 = vunpack.c.h.b16 %v373
        %v505 = vunpack.c.l.b16 %v374
        %v506 = vunpack.c.h.b16 %v374
        %v507 = vunpack.c.l.b16 %v375
        %v508 = vunpack.c.h.b16 %v375
        %v509 = vunpack.c.l.b16 %v376
        %v510 = vunpack.c.h.b16 %v376
        %v511 = vunpack.c.l.b16 %v377
        %v512 = vunpack.c.h.b16 %v377
        %v513 = vunpack.c.l.b16 %v378
        %v514 = vunpack.c.h.b16 %v378
        %v515 = vunpack.c.l.b16 %v379
        %v516 = vunpack.c.h.b16 %v379
        %v517 = vunpack.c.l.b16 %v380
        %v518 = vunpack.c.h.b16 %v380
        %v519 = vunpack.c.l.b16 %v381
        %v520 = vunpack.c.h.b16 %v381
        %v521 = vunpack.c.l.b16 %v382
        %v522 = vunpack.c.h.b16 %v382
        %v523 = vunpack.c.l.b16 %v383
        %v524 = vunpack.c.h.b16 %v383
        %v525 = vunpack.c.l.b16 %v384
        %v526 = vunpack.c.h.b16 %v384
        %v527 = vunpack.c.l.b16 %v385
        %v528 = vunpack.c.h.b16 %v385
        %v529 = vunpack.c.l.b16 %v386
        %v530 = vunpack.c.h.b16 %v386
        %v531 = vunpack.c.l.b16 %v387
        %v532 = vunpack.c.h.b16 %v387
        %v533 = vunpack.c.l.b16 %v388
        %v534 = vunpack.c.h.b16 %v388
        %v535 = vunpack.c.l.b16 %v389
        %v536 = vunpack.c.h.b16 %v389
        %v537 = vunpack.c.l.b16 %v390
        %v538 = vunpack.c.h.b16 %v390
        %v539 = vunpack.c.l.b16 %v391
        %v540 = vunpack.c.h.b16 %v391
        %v541 = vunpack.c.l.b16 %v392
        %v542 = vunpack.c.h.b16 %v392
        %v543 = vunpack.c.l.b16 %v393
        %v544 = vunpack.c.h.b16 %v393
        %v545 = vunpack.c.l.b16 %v394
        %v546 = vunpack.c.h.b16 %v394
        %v547 = vunpack.c.l.b16 %v395
        %v548 = vunpack.c.h.b16 %v395
        %v549 = vunpack.c.l.b16 %v396
        %v550 = vunpack.c.h.b16 %v396
        %v551 = vunpack.c.l.b16 %v397
        %v552 = vunpack.c.h.b16 %v397
        %v553 = vunpack.c.l.b16 %v398
        %v554 = vunpack.c.h.b16 %v398
        %v555 = vunpack.c.l.b16 %v399
        %v556 = vunpack.c.h.b16 %v399
        %v557 = vunpack.c.l.b16 %v400
        %v558 = vunpack.c.h.b16 %v400
        %v559 = vunpack.c.l.b16 %v401
        %v560 = vunpack.c.h.b16 %v401
        %v561 = vunpack.c.l.b16 %v402
        %v562 = vunpack.c.h.b16 %v402
        %v563 = vpack.c.b16 %v503, %v499
        %v564 = vpack.c.b16 %v504, %v500
        %v565 = vpack.c.b16 %v505, %v501
        %v566 = vpack.c.b16 %v506, %v502
        %v567 = vpack.c.b16 %v511, %v507
        %v568 = vpack.c.b16 %v512, %v508
        %v569 = vpack.c.b16 %v513, %v509
        %v570 = vpack.c.b16 %v514, %v510
        %v571 = vpack.c.b16 %v519, %v515
        %v572 = vpack.c.b16 %v520, %v516
        %v573 = vpack.c.b16 %v521, %v517
        %v574 = vpack.c.b16 %v522, %v518
        %v575 = vpack.c.b16 %v527, %v523
        %v576 = vpack.c.b16 %v528, %v524
        %v577 = vpack.c.b16 %v529, %v525
        %v578 = vpack.c.b16 %v530, %v526
        %v579 = vpack.c.b16 %v535, %v531
        %v580 = vpack.c.b16 %v536, %v532
        %v581 = vpack.c.b16 %v537, %v533
        %v582 = vpack.c.b16 %v538, %v534
        %v583 = vpack.c.b16 %v543, %v539
        %v584 = vpack.c.b16 %v544, %v540
        %v585 = vpack.c.b16 %v545, %v541
        %v586 = vpack.c.b16 %v546, %v542
        %v587 = vpack.c.b16 %v551, %v547
        %v588 = vpack.c.b16 %v552, %v548
        %v589 = vpack.c.b16 %v553, %v549
        %v590 = vpack.c.b16 %v554, %v550
        %v591 = vpack.c.b16 %v559, %v555
        %v592 = vpack.c.b16 %v560, %v556
        %v593 = vpack.c.b16 %v561, %v557
        %v594 = vpack.c.b16 %v562, %v558
        %v691 = vunpack.c.l.b16 %v403
        %v692 = vunpack.c.l.b16 %v404
        %v693 = vunpack.c.l.b16 %v405
        %v694 = vunpack.c.l.b16 %v406
        %v695 = vunpack.c.l.b16 %v407
        %v696 = vunpack.c.l.b16 %v408
        %v697 = vunpack.c.l.b16 %v409
        %v698 = vunpack.c.l.b16 %v410
        %v699 = vunpack.c.l.b16 %v411
        %v700 = vunpack.c.l.b16 %v412
        %v701 = vunpack.c.l.b16 %v413
        %v702 = vunpack.c.l.b16 %v414
        %v703 = vunpack.c.l.b16 %v415
        %v704 = vunpack.c.l.b16 %v416
        %v705 = vunpack.c.l.b16 %v417
        %v706 = vunpack.c.l.b16 %v418
        %v707 = vunpack.c.l.b16 %v419
        %v708 = vunpack.c.l.b16 %v420
        %v709 = vunpack.c.l.b16 %v421
        %v710 = vunpack.c.l.b16 %v422
        %v711 = vunpack.c.l.b16 %v423
        %v712 = vunpack.c.l.b16 %v424
        %v713 = vunpack.c.l.b16 %v425
        %v714 = vunpack.c.l.b16 %v426
        %v715 = vunpack.c.l.b16 %v427
        %v716 = vunpack.c.l.b16 %v428
        %v717 = vunpack.c.l.b16 %v429
        %v718 = vunpack.c.l.b16 %v430
        %v719 = vunpack.c.l.b16 %v431
        %v720 = vunpack.c.l.b16 %v432
        %v721 = vunpack.c.l.b16 %v433
        %v722 = vunpack.c.l.b16 %v434
        %v723 = vunpack.c.l.b16 %v435
        %v724 = vunpack.c.l.b16 %v436
        %v725 = vunpack.c.l.b16 %v437
        %v726 = vunpack.c.l.b16 %v438
        %v727 = vunpack.c.l.b16 %v439
        %v728 = vunpack.c.l.b16 %v440
        %v729 = vunpack.c.l.b16 %v441
        %v730 = vunpack.c.l.b16 %v442
        %v731 = vunpack.c.l.b16 %v443
        %v732 = vunpack.c.l.b16 %v444
        %v733 = vunpack.c.l.b16 %v445
        %v734 = vunpack.c.l.b16 %v446
        %v735 = vunpack.c.l.b16 %v447
        %v736 = vunpack.c.l.b16 %v448
        %v737 = vunpack.c.l.b16 %v449
        %v738 = vunpack.c.l.b16 %v450
        %v739 = vunpack.c.l.b16 %v451
        %v740 = vunpack.c.l.b16 %v452
        %v741 = vunpack.c.l.b16 %v453
        %v742 = vunpack.c.l.b16 %v454
        %v743 = vunpack.c.l.b16 %v455
        %v744 = vunpack.c.l.b16 %v456
        %v745 = vunpack.c.l.b16 %v457
        %v746 = vunpack.c.l.b16 %v458
        %v747 = vunpack.c.l.b16 %v459
        %v748 = vunpack.c.l.b16 %v460
        %v749 = vunpack.c.l.b16 %v461
        %v750 = vunpack.c.l.b16 %v462
        %v751 = vunpack.c.l.b16 %v463
        %v752 = vunpack.c.l.b16 %v464
        %v753 = vunpack.c.l.b16 %v465
        %v754 = vunpack.c.l.b16 %v466
        %v755 = vpack.c.b16 %v692, %v691
        %v756 = vpack.c.b16 %v694, %v693
        %v757 = vpack.c.b16 %v696, %v695
        %v758 = vpack.c.b16 %v698, %v697
        %v759 = vpack.c.b16 %v700, %v699
        %v760 = vpack.c.b16 %v702, %v701
        %v761 = vpack.c.b16 %v704, %v703
        %v762 = vpack.c.b16 %v706, %v705
        %v763 = vpack.c.b16 %v708, %v707
        %v764 = vpack.c.b16 %v710, %v709
        %v765 = vpack.c.b16 %v712, %v711
        %v766 = vpack.c.b16 %v714, %v713
        %v767 = vpack.c.b16 %v716, %v715
        %v768 = vpack.c.b16 %v718, %v717
        %v769 = vpack.c.b16 %v720, %v719
        %v770 = vpack.c.b16 %v722, %v721
        %v771 = vpack.c.b16 %v724, %v723
        %v772 = vpack.c.b16 %v726, %v725
        %v773 = vpack.c.b16 %v728, %v727
        %v774 = vpack.c.b16 %v730, %v729
        %v775 = vpack.c.b16 %v732, %v731
        %v776 = vpack.c.b16 %v734, %v733
        %v777 = vpack.c.b16 %v736, %v735
        %v778 = vpack.c.b16 %v738, %v737
        %v779 = vpack.c.b16 %v740, %v739
        %v780 = vpack.c.b16 %v742, %v741
        %v781 = vpack.c.b16 %v744, %v743
        %v782 = vpack.c.b16 %v746, %v745
        %v783 = vpack.c.b16 %v748, %v747
        %v784 = vpack.c.b16 %v750, %v749
        %v785 = vpack.c.b16 %v752, %v751
        %v786 = vpack.c.b16 %v754, %v753
        %819 = vmatpush.bf16.msra.mxu0 %v762
        %820 = vmatpush.bf16.msra.mxu0 %v761
        %821 = vmatpush.bf16.msra.mxu0 %v760
        %822 = vmatpush.bf16.msra.mxu0 %v759
        %823 = vmatpush.bf16.msra.mxu0 %v758
        %824 = vmatpush.bf16.msra.mxu0 %v757
        %825 = vmatpush.bf16.msra.mxu0 %v756
        %826 = vmatpush.bf16.msra.mxu0 %v755
        %827 = vmatmul.bf16.gmra.mxu0 %v563
        %v828 = vpop.f32.mrf.mxu0
        %v829 = vadd.f32 0.0, %v828
        %v830 = vpop.f32.mrf.mxu0
        %v831 = vadd.f32 0.0, %v830
        %832 = vmatmul.bf16.gmra.mxu0 %v567
        %v833 = vpop.f32.mrf.mxu0
        %v834 = vadd.f32 0.0, %v833
        %v835 = vpop.f32.mrf.mxu0
        %v836 = vadd.f32 0.0, %v835
        %837 = vmatmul.bf16.gmra.mxu0 %v571
        %v838 = vpop.f32.mrf.mxu0
        %v839 = vadd.f32 0.0, %v838
        %v840 = vpop.f32.mrf.mxu0
        %v841 = vadd.f32 0.0, %v840
        %842 = vmatmul.bf16.gmra.mxu0 %v575
        %v843 = vpop.f32.mrf.mxu0
        %v844 = vadd.f32 0.0, %v843
        %v845 = vpop.f32.mrf.mxu0
        %v846 = vadd.f32 0.0, %v845
        %847 = vmatmul.bf16.gmra.mxu0 %v579
        %v848 = vpop.f32.mrf.mxu0
        %v849 = vadd.f32 0.0, %v848
        %v850 = vpop.f32.mrf.mxu0
        %v851 = vadd.f32 0.0, %v850
        %852 = vmatmul.bf16.gmra.mxu0 %v583
        %v853 = vpop.f32.mrf.mxu0
        %v854 = vadd.f32 0.0, %v853
        %v855 = vpop.f32.mrf.mxu0
        %v856 = vadd.f32 0.0, %v855
        %857 = vmatmul.bf16.gmra.mxu0 %v587
        %v858 = vpop.f32.mrf.mxu0
        %v859 = vadd.f32 0.0, %v858
        %v860 = vpop.f32.mrf.mxu0
        %v861 = vadd.f32 0.0, %v860
        %862 = vmatmul.bf16.gmra.mxu0 %v591
        %v863 = vpop.f32.mrf.mxu0
        %v864 = vadd.f32 0.0, %v863
        %v865 = vpop.f32.mrf.mxu0
        %v866 = vadd.f32 0.0, %v865
        %867 = vdwg.mxu0
        %868 = vmatpush.bf16.msra.mxu0 %v770
        %869 = vmatpush.bf16.msra.mxu0 %v769
        %870 = vmatpush.bf16.msra.mxu0 %v768
        %871 = vmatpush.bf16.msra.mxu0 %v767
        %872 = vmatpush.bf16.msra.mxu0 %v766
        %873 = vmatpush.bf16.msra.mxu0 %v765
        %874 = vmatpush.bf16.msra.mxu0 %v764
        %875 = vmatpush.bf16.msra.mxu0 %v763
        %876 = vmatmul.bf16.gmra.mxu0 %v564
        %v877 = vpop.f32.mrf.mxu0
        %v878 = vadd.f32 %v829, %v877
        %v879 = vpop.f32.mrf.mxu0
        %v880 = vadd.f32 %v831, %v879
        %881 = vmatmul.bf16.gmra.mxu0 %v568
        %v882 = vpop.f32.mrf.mxu0
        %v883 = vadd.f32 %v834, %v882
        %v884 = vpop.f32.mrf.mxu0
        %v885 = vadd.f32 %v836, %v884
        %886 = vmatmul.bf16.gmra.mxu0 %v572
        %v887 = vpop.f32.mrf.mxu0
        %v888 = vadd.f32 %v839, %v887
        %v889 = vpop.f32.mrf.mxu0
        %v890 = vadd.f32 %v841, %v889
        %891 = vmatmul.bf16.gmra.mxu0 %v576
        %v892 = vpop.f32.mrf.mxu0
        %v893 = vadd.f32 %v844, %v892
        %v894 = vpop.f32.mrf.mxu0
        %v895 = vadd.f32 %v846, %v894
        %896 = vmatmul.bf16.gmra.mxu0 %v580
        %v897 = vpop.f32.mrf.mxu0
        %v898 = vadd.f32 %v849, %v897
        %v899 = vpop.f32.mrf.mxu0
        %v900 = vadd.f32 %v851, %v899
        %901 = vmatmul.bf16.gmra.mxu0 %v584
        %v902 = vpop.f32.mrf.mxu0
        %v903 = vadd.f32 %v854, %v902
        %v904 = vpop.f32.mrf.mxu0
        %v905 = vadd.f32 %v856, %v904
        %906 = vmatmul.bf16.gmra.mxu0 %v588
        %v907 = vpop.f32.mrf.mxu0
        %v908 = vadd.f32 %v859, %v907
        %v909 = vpop.f32.mrf.mxu0
        %v910 = vadd.f32 %v861, %v909
        %911 = vmatmul.bf16.gmra.mxu0 %v592
        %v912 = vpop.f32.mrf.mxu0
        %v913 = vadd.f32 %v864, %v912
        %v914 = vpop.f32.mrf.mxu0
        %v915 = vadd.f32 %v866, %v914
        %916 = vdwg.mxu0
        %917 = vmatpush.bf16.msra.mxu0 %v778
        %918 = vmatpush.bf16.msra.mxu0 %v777
        %919 = vmatpush.bf16.msra.mxu0 %v776
        %920 = vmatpush.bf16.msra.mxu0 %v775
        %921 = vmatpush.bf16.msra.mxu0 %v774
        %922 = vmatpush.bf16.msra.mxu0 %v773
        %923 = vmatpush.bf16.msra.mxu0 %v772
        %924 = vmatpush.bf16.msra.mxu0 %v771
        %925 = vmatmul.bf16.gmra.mxu0 %v565
        %v926 = vpop.f32.mrf.mxu0
        %v927 = vadd.f32 %v878, %v926
        %v928 = vpop.f32.mrf.mxu0
        %v929 = vadd.f32 %v880, %v928
        %930 = vmatmul.bf16.gmra.mxu0 %v569
        %v931 = vpop.f32.mrf.mxu0
        %v932 = vadd.f32 %v883, %v931
        %v933 = vpop.f32.mrf.mxu0
        %v934 = vadd.f32 %v885, %v933
        %935 = vmatmul.bf16.gmra.mxu0 %v573
        %v936 = vpop.f32.mrf.mxu0
        %v937 = vadd.f32 %v888, %v936
        %v938 = vpop.f32.mrf.mxu0
        %v939 = vadd.f32 %v890, %v938
        %940 = vmatmul.bf16.gmra.mxu0 %v577
        %v941 = vpop.f32.mrf.mxu0
        %v942 = vadd.f32 %v893, %v941
        %v943 = vpop.f32.mrf.mxu0
        %v944 = vadd.f32 %v895, %v943
        %945 = vmatmul.bf16.gmra.mxu0 %v581
        %v946 = vpop.f32.mrf.mxu0
        %v947 = vadd.f32 %v898, %v946
        %v948 = vpop.f32.mrf.mxu0
        %v949 = vadd.f32 %v900, %v948
        %950 = vmatmul.bf16.gmra.mxu0 %v585
        %v951 = vpop.f32.mrf.mxu0
        %v952 = vadd.f32 %v903, %v951
        %v953 = vpop.f32.mrf.mxu0
        %v954 = vadd.f32 %v905, %v953
        %955 = vmatmul.bf16.gmra.mxu0 %v589
        %v956 = vpop.f32.mrf.mxu0
        %v957 = vadd.f32 %v908, %v956
        %v958 = vpop.f32.mrf.mxu0
        %v959 = vadd.f32 %v910, %v958
        %960 = vmatmul.bf16.gmra.mxu0 %v593
        %v961 = vpop.f32.mrf.mxu0
        %v962 = vadd.f32 %v913, %v961
        %v963 = vpop.f32.mrf.mxu0
        %v964 = vadd.f32 %v915, %v963
        %965 = vdwg.mxu0
        %966 = vmatpush.bf16.msra.mxu0 %v786
        %967 = vmatpush.bf16.msra.mxu0 %v785
        %968 = vmatpush.bf16.msra.mxu0 %v784
        %969 = vmatpush.bf16.msra.mxu0 %v783
        %970 = vmatpush.bf16.msra.mxu0 %v782
        %971 = vmatpush.bf16.msra.mxu0 %v781
        %972 = vmatpush.bf16.msra.mxu0 %v780
        %973 = vmatpush.bf16.msra.mxu0 %v779
        %974 = vmatmul.bf16.gmra.mxu0 %v566
        %v975 = vpop.f32.mrf.mxu0
        %v976 = vadd.f32 %v927, %v975
        %v977 = vpop.f32.mrf.mxu0
        %v978 = vadd.f32 %v929, %v977
        %979 = vmatmul.bf16.gmra.mxu0 %v570
        %v980 = vpop.f32.mrf.mxu0
        %v981 = vadd.f32 %v932, %v980
        %v982 = vpop.f32.mrf.mxu0
        %v983 = vadd.f32 %v934, %v982
        %984 = vmatmul.bf16.gmra.mxu0 %v574
        %v985 = vpop.f32.mrf.mxu0
        %v986 = vadd.f32 %v937, %v985
        %v987 = vpop.f32.mrf.mxu0
        %v988 = vadd.f32 %v939, %v987
        %989 = vmatmul.bf16.gmra.mxu0 %v578
        %v990 = vpop.f32.mrf.mxu0
        %v991 = vadd.f32 %v942, %v990
        %v992 = vpop.f32.mrf.mxu0
        %v993 = vadd.f32 %v944, %v992
        %994 = vmatmul.bf16.gmra.mxu0 %v582
        %v995 = vpop.f32.mrf.mxu0
        %v996 = vadd.f32 %v947, %v995
        %v997 = vpop.f32.mrf.mxu0
        %v998 = vadd.f32 %v949, %v997
        %999 = vmatmul.bf16.gmra.mxu0 %v586
        %v1000 = vpop.f32.mrf.mxu0
        %v1001 = vadd.f32 %v952, %v1000
        %v1002 = vpop.f32.mrf.mxu0
        %v1003 = vadd.f32 %v954, %v1002
        %1004 = vmatmul.bf16.gmra.mxu0 %v590
        %v1005 = vpop.f32.mrf.mxu0
        %v1006 = vadd.f32 %v957, %v1005
        %v1007 = vpop.f32.mrf.mxu0
        %v1008 = vadd.f32 %v959, %v1007
        %1009 = vmatmul.bf16.gmra.mxu0 %v594
        %v1010 = vpop.f32.mrf.mxu0
        %v1011 = vadd.f32 %v962, %v1010
        %v1012 = vpop.f32.mrf.mxu0
        %v1013 = vadd.f32 %v964, %v1012
        %1014 = vdwg.mxu0
        %v1015 = vadd.f32 %v355, %v976
        %v1016 = vadd.f32 %v356, %v978
        %v1017 = vadd.f32 %v357, %v981
        %v1018 = vadd.f32 %v358, %v983
        %v1019 = vadd.f32 %v359, %v986
        %v1020 = vadd.f32 %v360, %v988
        %v1021 = vadd.f32 %v361, %v991
        %v1022 = vadd.f32 %v362, %v993
        %v1023 = vadd.f32 %v363, %v996
        %v1024 = vadd.f32 %v364, %v998
        %v1025 = vadd.f32 %v365, %v1001
        %v1026 = vadd.f32 %v366, %v1003
        %v1027 = vadd.f32 %v367, %v1006
        %v1028 = vadd.f32 %v368, %v1008
        %v1029 = vadd.f32 %v369, %v1011
        %v1030 = vadd.f32 %v370, %v1013
        %1031 = vst [vmem:[#allocation2] sm:$0xff] %v1015
        %1032 = vst [vmem:[#allocation2 + $0x8] sm:$0xff] %v1016
        %1033 = vst [vmem:[#allocation2 + $0x10] sm:$0xff] %v1017
        %1034 = vst [vmem:[#allocation2 + $0x18] sm:$0xff] %v1018
        %1035 = vst [vmem:[#allocation2 + $0x20] sm:$0xff] %v1019
        %1036 = vst [vmem:[#allocation2 + $0x28] sm:$0xff] %v1020
        %1037 = vst [vmem:[#allocation2 + $0x30] sm:$0xff] %v1021
        %1038 = vst [vmem:[#allocation2 + $0x38] sm:$0xff] %v1022
        %1039 = vst [vmem:[#allocation2 + $0x40] sm:$0xff] %v1023
        %1040 = vst [vmem:[#allocation2 + $0x48] sm:$0xff] %v1024
        %1041 = vst [vmem:[#allocation2 + $0x50] sm:$0xff] %v1025
        %1042 = vst [vmem:[#allocation2 + $0x58] sm:$0xff] %v1026
        %1043 = vst [vmem:[#allocation2 + $0x60] sm:$0xff] %v1027
        %1044 = vst [vmem:[#allocation2 + $0x68] sm:$0xff] %v1028
        %1045 = vst [vmem:[#allocation2 + $0x70] sm:$0xff] %v1029
        %1046 = vst [vmem:[#allocation2 + $0x78] sm:$0xff] %v1030
        %p1047 = scmp.eq.s32.totalorder %s21, 1
        // Predicated region
        $region60: #{model_wrapper_forward.1} parent=50 // pred_check
          %p1048 = pneg %p1047
        $region61: #{model_wrapper_forward.1} parent=50 // pred_check_branch
          %1050 = sbr.rel (%p1048) target = $region63
        $region62: #{model_wrapper_forward.1} parent=50 // pred_region
          %v1051 = vld [vmem:[#allocation2] sm:$0xff]
          %v1052 = vld [vmem:[#allocation2 + $0x8] sm:$0xff]
          %v1053 = vld [vmem:[#allocation2 + $0x10] sm:$0xff]
          %v1054 = vld [vmem:[#allocation2 + $0x18] sm:$0xff]
          %v1055 = vld [vmem:[#allocation2 + $0x20] sm:$0xff]
          %v1056 = vld [vmem:[#allocation2 + $0x28] sm:$0xff]
          %v1057 = vld [vmem:[#allocation2 + $0x30] sm:$0xff]
          %v1058 = vld [vmem:[#allocation2 + $0x38] sm:$0xff]
          %v1059 = vld [vmem:[#allocation2 + $0x40] sm:$0xff]
          %v1060 = vld [vmem:[#allocation2 + $0x48] sm:$0xff]
          %v1061 = vld [vmem:[#allocation2 + $0x50] sm:$0xff]
          %v1062 = vld [vmem:[#allocation2 + $0x58] sm:$0xff]
          %v1063 = vld [vmem:[#allocation2 + $0x60] sm:$0xff]
          %v1064 = vld [vmem:[#allocation2 + $0x68] sm:$0xff]
          %v1065 = vld [vmem:[#allocation2 + $0x70] sm:$0xff]
          %v1066 = vld [vmem:[#allocation2 + $0x78] sm:$0xff]
          %v1067 = vld [vmem:[%s325] sm:$0x1]
          %v1069 = vperm.slane %v1067, 0
          %v1071 = vadd.f32 %v1051, %v1069
          %v1072 = vadd.f32 %v1052, %v1069
          %v1073 = vadd.f32 %v1053, %v1069
          %v1074 = vadd.f32 %v1054, %v1069
          %v1075 = vadd.f32 %v1055, %v1069
          %v1076 = vadd.f32 %v1056, %v1069
          %v1077 = vadd.f32 %v1057, %v1069
          %v1078 = vadd.f32 %v1058, %v1069
          %v1079 = vadd.f32 %v1059, %v1069
          %v1080 = vadd.f32 %v1060, %v1069
          %v1081 = vadd.f32 %v1061, %v1069
          %v1082 = vadd.f32 %v1062, %v1069
          %v1083 = vadd.f32 %v1063, %v1069
          %v1084 = vadd.f32 %v1064, %v1069
          %v1085 = vadd.f32 %v1065, %v1069
          %v1086 = vadd.f32 %v1066, %v1069
          %1087 = vst [vmem:[%s333] sm:$0xff] %v1071
          %1088 = vst [vmem:[%s333 + $0x8] sm:$0xff] %v1072
          %1089 = vst [vmem:[%s333 + $0x10] sm:$0xff] %v1073
          %1090 = vst [vmem:[%s333 + $0x18] sm:$0xff] %v1074
          %1091 = vst [vmem:[%s333 + $0x20] sm:$0xff] %v1075
          %1092 = vst [vmem:[%s333 + $0x28] sm:$0xff] %v1076
          %1093 = vst [vmem:[%s333 + $0x30] sm:$0xff] %v1077
          %1094 = vst [vmem:[%s333 + $0x38] sm:$0xff] %v1078
          %1095 = vst [vmem:[%s333 + $0x40] sm:$0xff] %v1079
          %1096 = vst [vmem:[%s333 + $0x48] sm:$0xff] %v1080
          %1097 = vst [vmem:[%s333 + $0x50] sm:$0xff] %v1081
          %1098 = vst [vmem:[%s333 + $0x58] sm:$0xff] %v1082
          %1099 = vst [vmem:[%s333 + $0x60] sm:$0xff] %v1083
          %1100 = vst [vmem:[%s333 + $0x68] sm:$0xff] %v1084
          %1101 = vst [vmem:[%s333 + $0x70] sm:$0xff] %v1085
          %1102 = vst [vmem:[%s333 + $0x78] sm:$0xff] %v1086
        $region63: #{model_wrapper_forward.1} parent=50 // pred_fallthru
          _
        %s1103 = smul.u32 16, %s19
        %p1104 = scmp.lt.s32.totalorder %s1103, 15
        %s1105 = scalar_select %p1104, %s1103, 15
        %p1106 = scmp.lt.s32.totalorder %s20, 0
        %s1107 = scalar_select %p1106, %s20, 0
        %s1108 = sadd.s32 %s1107, %s1105
        %s1109 = smul.addr %s1108, 8
        %s1110 = scalar_lea.vmem %s3, %s1109
        // Predicated region
        $region64: #{model_wrapper_forward.1} parent=50 // pred_check
          %p1111 = pneg %p135
        $region65: #{model_wrapper_forward.1} parent=50 // pred_check_branch
          %1113 = sbr.rel (%p1111) target = $region67
        $region66: #{model_wrapper_forward.1} parent=50 // pred_region
          %s1114 = smul.u32 16, %s19
        $region67: #{model_wrapper_forward.1} parent=50 // pred_fallthru
          _
        // Predicated region
        $region68: #{model_wrapper_forward.1} parent=50 // pred_check
          %p1115 = pneg %p135
        $region69: #{model_wrapper_forward.1} parent=50 // pred_check_branch
          %1117 = sbr.rel (%p1115) target = $region71
        $region70: #{model_wrapper_forward.1} parent=50 // pred_region
          %s1118 = smul.u32 16, %s19
          %p1119 = scmp.lt.s32.totalorder %s1118, 15
          %s1120 = scalar_select %p1119, %s1118, 15
          %p1121 = scmp.lt.s32.totalorder %s20, 0
          %s1122 = scalar_select %p1121, %s20, 0
          %s1123 = sadd.s32 %s1122, %s1120
          %s1124 = smul.addr %s1123, 8
          %s1125 = scalar_lea.vmem %s3, %s1124
        $region71: #{model_wrapper_forward.1} parent=50 // pred_fallthru
          _
      $region51: #{model_wrapper_forward.1} parent=5 // pred_fallthru
        _
      %p1126 = scmp.le.s32.totalorder 2, %s9
      // Predicated region
      $region72: #{model_wrapper_forward.1} parent=5 // pred_check
        %p1127 = pneg %p1126
      $region73: #{model_wrapper_forward.1} parent=5 // pred_check_branch
        %1129 = sbr.rel (%p1127) target = $region75
      $region74: #{model_wrapper_forward.1} parent=5 // pred_region
        %s1130 = ssub.s32 %s9, 2
      $region75: #{model_wrapper_forward.1} parent=5 // pred_fallthru
        _
    $region6: #{model_wrapper_forward.1} parent=1 // loop_footer
      %s13 = sadd.s32 1, %s9
    $region7: #{model_wrapper_forward.1} parent=1 // loop_footer_branch
      %8 = sbr.rel target = $region3
    $region8: #{model_wrapper_forward.1} parent=1 // loop_exit
      _

</llo_original>
